<compile_context>
chip_gen: v6e
topology: v6e:2x2x1
jax: 0.10.0
libtpu: 0.0.40
codegen_flags: <defaults>
</compile_context>

<pallas_src>
import jax
import jax.numpy as jnp
from jax.experimental import pallas as pl
from jax.experimental.pallas import tpu as pltpu


def _round_up(x, m):
    return (x + m - 1) // m * m


def _cnn_block_kernel(p_ref, w_ref, scale_ref, bias_ref, o_ref):
    """Fused im2col-matmul conv + BatchNorm(eval) + SiLU for one M-tile.

    p_ref:     (tm, Kp)  bf16 im2col patches (zero-padded along K)
    w_ref:     (Kp, Cp)  bf16 reshaped conv weight (zero-padded along K, Cout)
    scale_ref: (1, Cp)   f32 folded BN scale = gamma / sqrt(var + eps)
    bias_ref:  (1, Cp)   f32 folded BN bias  = beta - mean * scale
    o_ref:     (tm, Cp)  output tile
    """
    acc = jnp.dot(p_ref[...], w_ref[...], preferred_element_type=jnp.float32)
    y = acc * scale_ref[...] + bias_ref[...]   # eval-mode BN, f32
    y = y * jax.nn.sigmoid(y)                  # SiLU; sigmoid goes to the EUP
    o_ref[...] = y.astype(o_ref.dtype)


def cnn_block_forward(x_nchw, weight_oihw, gamma, beta, running_mean,
                      running_var, *, stride=1, padding=1, eps=1e-5):
    """CNNBlock forward: Conv2d(bias=False, groups=1) -> BatchNorm2d -> SiLU."""
    N, Cin, H, W = x_nchw.shape
    Cout, _, KH, KW = weight_oihw.shape

    Ho = (H + 2 * padding - KH) // stride + 1
    Wo = (W + 2 * padding - KW) // stride + 1

    # --- wrapper glue: layout change, padding, im2col (plain JAX) -----------
    x_nhwc = jnp.transpose(x_nchw, (0, 2, 3, 1))                  # NCHW -> NHWC
    x_pad = jnp.pad(x_nhwc, ((0, 0), (padding, padding),
                             (padding, padding), (0, 0)))

    # im2col patches: (N, Ho, Wo, KH*KW*Cin); tap order (kh, kw, ci) matches
    # the HWIO weight reshape below.
    taps = []
    for kh in range(KH):
        for kw in range(KW):
            taps.append(jax.lax.slice(
                x_pad,
                (0, kh, kw, 0),
                (N, kh + (Ho - 1) * stride + 1,
                 kw + (Wo - 1) * stride + 1, Cin),
                (1, stride, stride, 1)))
    patches = jnp.concatenate(taps, axis=-1)

    K = KH * KW * Cin
    M = N * Ho * Wo
    Kp = _round_up(max(K, 128), 128)           # lane-dense contraction dim
    Cp = _round_up(max(Cout, 128), 128)        # lane-dense output dim
    tm = 256 if M >= 256 else _round_up(M, 8)  # rows of M per grid step
    Mp = _round_up(M, tm)

    patches = patches.reshape(M, K).astype(jnp.bfloat16)
    patches = jnp.pad(patches, ((0, Mp - M), (0, Kp - K)))

    w = jnp.transpose(weight_oihw, (2, 3, 1, 0))                  # OIHW -> HWIO
    w = w.reshape(K, Cout).astype(jnp.bfloat16)
    w = jnp.pad(w, ((0, Kp - K), (0, Cp - Cout)))

    # Fold BatchNorm (eval mode) into per-channel scale/bias, kept in f32.
    scale = (gamma / jnp.sqrt(running_var + eps)).astype(jnp.float32)
    bias = (beta - running_mean * scale).astype(jnp.float32)
    scale = jnp.pad(scale, (0, Cp - Cout)).reshape(1, Cp)
    bias = jnp.pad(bias, (0, Cp - Cout)).reshape(1, Cp)

    out_dtype = x_nchw.dtype
    cost = pl.CostEstimate(
        flops=2 * M * K * Cout,
        transcendentals=M * Cout,
        bytes_accessed=(patches.size * 2 + w.size * 2
                        + Mp * Cp * jnp.dtype(out_dtype).itemsize),
    )

    out2d = pl.pallas_call(
        _cnn_block_kernel,
        out_shape=jax.ShapeDtypeStruct((Mp, Cp), out_dtype),
        grid_spec=pltpu.PrefetchScalarGridSpec(
            num_scalar_prefetch=0,
            grid=(Mp // tm,),
            in_specs=[
                pl.BlockSpec((tm, Kp), lambda i: (i, 0)),
                pl.BlockSpec((Kp, Cp), lambda i: (0, 0)),
                pl.BlockSpec((1, Cp), lambda i: (0, 0)),
                pl.BlockSpec((1, Cp), lambda i: (0, 0)),
            ],
            out_specs=pl.BlockSpec((tm, Cp), lambda i: (i, 0)),
        ),
        compiler_params=pltpu.CompilerParams(
            dimension_semantics=("parallel",)),
        cost_estimate=cost,
    )(patches, w, scale, bias)

    out = out2d[:M, :Cout].reshape(N, Ho, Wo, Cout)               # drop padding
    return jnp.transpose(out, (0, 3, 1, 2))                       # NHWC -> NCHW


def _reference(x_nchw, weight_oihw, gamma, beta, running_mean, running_var,
               *, stride=1, padding=1, eps=1e-5):
    """Pure-JAX f32 reference for sanity checking."""
    y = jax.lax.conv_general_dilated(
        x_nchw.astype(jnp.float32), weight_oihw.astype(jnp.float32),
        window_strides=(stride, stride),
        padding=((padding, padding), (padding, padding)),
        dimension_numbers=("NCHW", "OIHW", "NCHW"))
    scale = gamma / jnp.sqrt(running_var + eps)
    bias = beta - running_mean * scale
    y = y * scale[None, :, None, None] + bias[None, :, None, None]
    return y * jax.nn.sigmoid(y)


if __name__ == "__main__":
    key = jax.random.PRNGKey(0)
    k_x, k_w, k_g, k_b, k_m, k_v = jax.random.split(key, 6)

    # CNNBlock(conv_func=nn.Conv2d, in_channels=4, out_channels=8,
    #          kernel_size=3, stride=1, padding=1, groups=1)
    N, Cin, H, W = 2, 4, 16, 16
    Cout, KH, KW = 8, 3, 3
    stride, padding = 1, 1

    x = jax.random.normal(k_x, (N, Cin, H, W), dtype=jnp.float32)
    weight = 0.1 * jax.random.normal(k_w, (Cout, Cin, KH, KW), dtype=jnp.float32)
    gamma = 1.0 + 0.1 * jax.random.normal(k_g, (Cout,), dtype=jnp.float32)
    beta = 0.1 * jax.random.normal(k_b, (Cout,), dtype=jnp.float32)
    running_mean = 0.1 * jax.random.normal(k_m, (Cout,), dtype=jnp.float32)
    running_var = 1.0 + 0.1 * jax.random.uniform(k_v, (Cout,), dtype=jnp.float32)

    out = cnn_block_forward(x, weight, gamma, beta, running_mean, running_var,
                            stride=stride, padding=padding)
    out = jax.block_until_ready(out)

    ref = _reference(x, weight, gamma, beta, running_mean, running_var,
                     stride=stride, padding=padding)
    assert out.shape == (N, Cout, H, W), out.shape
    # bf16 matmul operands (f32 accumulate) -> slightly wider tolerance.
    assert jnp.allclose(out, ref, atol=3e-2, rtol=3e-2), \
        float(jnp.max(jnp.abs(out - ref)))

    print("KERNEL_OK")
</pallas_src>

<mosaic_0001>
module attributes {stable_mosaic.version = 11 : i64} {
  func.func @_cnn_block_kernel(%arg0: i32, %arg1: memref<256x128xbf16, #tpu.memory_space<vmem>>, %arg2: memref<128x128xbf16, #tpu.memory_space<vmem>>, %arg3: memref<1x128xf32, #tpu.memory_space<vmem>>, %arg4: memref<1x128xf32, #tpu.memory_space<vmem>>, %arg5: memref<256x128xf32, #tpu.memory_space<vmem>>) attributes {dimension_semantics = [#tpu.dimension_semantics<parallel>], iteration_bounds = array<i64: 2>, scalar_prefetch = 0 : i64, scratch_operands = 0 : i64, tpu.core_type = #tpu.core_type<tc>, window_params = [{transform_indices = @transform_0, window_bounds = array<i64: 256, 128>}, {pipeline_mode = #tpu.pipeline_mode<synchronous>, transform_indices = @transform_1, window_bounds = array<i64: 128, 128>}, {pipeline_mode = #tpu.pipeline_mode<synchronous>, transform_indices = @transform_2, window_bounds = array<i64: 1, 128>}, {pipeline_mode = #tpu.pipeline_mode<synchronous>, transform_indices = @transform_3, window_bounds = array<i64: 1, 128>}, {transform_indices = @transform_4, window_bounds = array<i64: 256, 128>}]} {
    %c0 = arith.constant 0 : index
    %c0_0 = arith.constant 0 : index
    %0 = vector.load %arg1[%c0, %c0_0] : memref<256x128xbf16, #tpu.memory_space<vmem>>, vector<256x128xbf16>
    %c0_1 = arith.constant 0 : index
    %c0_2 = arith.constant 0 : index
    %1 = vector.load %arg2[%c0_1, %c0_2] : memref<128x128xbf16, #tpu.memory_space<vmem>>, vector<128x128xbf16>
    %cst = arith.constant dense<0.000000e+00> : vector<256x128xf32>
    %2 = tpu.matmul %0, %1, %cst {dimension_numbers = #tpu.dot_dimension_numbers<[1], [0], [0], [1], [0, 0, 1, 1], [], []>} : vector<256x128xbf16>, vector<128x128xbf16>, vector<256x128xf32> -> vector<256x128xf32>
    %c0_3 = arith.constant 0 : index
    %c0_4 = arith.constant 0 : index
    %3 = vector.load %arg3[%c0_3, %c0_4] : memref<1x128xf32, #tpu.memory_space<vmem>>, vector<1x128xf32>
    %4 = vector.broadcast %3 : vector<1x128xf32> to vector<256x128xf32>
    %5 = arith.mulf %2, %4 : vector<256x128xf32>
    %c0_5 = arith.constant 0 : index
    %c0_6 = arith.constant 0 : index
    %6 = vector.load %arg4[%c0_5, %c0_6] : memref<1x128xf32, #tpu.memory_space<vmem>>, vector<1x128xf32>
    %7 = vector.broadcast %6 : vector<1x128xf32> to vector<256x128xf32>
    %8 = arith.addf %5, %7 : vector<256x128xf32>
    %9 = arith.negf %8 : vector<256x128xf32>
    %10 = math.exp %9 : vector<256x128xf32>
    %cst_7 = arith.constant 1.000000e+00 : f32
    %11 = vector.broadcast %cst_7 : f32 to vector<256x128xf32>
    %12 = arith.addf %11, %10 : vector<256x128xf32>
    %13 = arith.divf %11, %12 : vector<256x128xf32>
    %14 = arith.mulf %8, %13 : vector<256x128xf32>
    %c0_8 = arith.constant 0 : index
    %c0_9 = arith.constant 0 : index
    %15 = vector.load %arg5[%c0_8, %c0_9] : memref<256x128xf32, #tpu.memory_space<vmem>>, vector<256x128xf32>
    tpu.vector_store %arg5[%c0_8, %c0_9], %14 {strides = array<i32>} : memref<256x128xf32, #tpu.memory_space<vmem>>, vector<256x128xf32>,
    return
  }
  func.func @transform_0(%arg0: i32) -> (i32, i32) {
    %c0_i32 = arith.constant 0 : i32
    %c0_i32_0 = arith.constant 0 : i32
    return %arg0, %c0_i32 : i32, i32
  }
  func.func @transform_1(%arg0: i32) -> (i32, i32) {
    %c0_i32 = arith.constant 0 : i32
    %c0_i32_0 = arith.constant 0 : i32
    %c0_i32_1 = arith.constant 0 : i32
    return %c0_i32, %c0_i32_0 : i32, i32
  }
  func.func @transform_2(%arg0: i32) -> (i32, i32) {
    %c0_i32 = arith.constant 0 : i32
    %c0_i32_0 = arith.constant 0 : i32
    %c0_i32_1 = arith.constant 0 : i32
    return %c0_i32, %c0_i32_0 : i32, i32
  }
  func.func @transform_3(%arg0: i32) -> (i32, i32) {
    %c0_i32 = arith.constant 0 : i32
    %c0_i32_0 = arith.constant 0 : i32
    %c0_i32_1 = arith.constant 0 : i32
    return %c0_i32, %c0_i32_0 : i32, i32
  }
  func.func @transform_4(%arg0: i32) -> (i32, i32) {
    %c0_i32 = arith.constant 0 : i32
    %c0_i32_0 = arith.constant 0 : i32
    return %arg0, %c0_i32 : i32, i32
  }
}

</mosaic_0001>

<llo_original>
// kernel: tpu_custom_call.1
$region0: #{tpu_custom_call.1}
  #allocation0 [shape = 'u32[]', space=smem, size = 0x4, offset = 0x4, fixed_abs, tag = 'smem constant byte address 0x4 - core index']
  #allocation1 [shape = 'u32[144,128]{1,0:T(1,128)}', space=vmem, size = 0x12000, scoped, tag = 'internal scratch']
  %s0 = inlined_call_operand.hbm [shape: bf16[512,128], index: 0, kind: input, shape index: {}]
  %s1 = inlined_call_operand.hbm [shape: bf16[128,128], index: 1, kind: input, shape index: {}]
  %s2 = inlined_call_operand.vmem [shape: f32[1,128], index: 2, kind: input, shape index: {}]
  %s3 = inlined_call_operand.vmem [shape: f32[1,128], index: 3, kind: input, shape index: {}]
  %s4 = inlined_call_operand.hbm [shape: f32[512,128], index: 4, kind: output, shape index: {}]
  %s5 = sld [smem:[#allocation0]]
  $region57: #{tpu_custom_call.1} parent=0
    _
  %s7 = ssub.s32 1, %s5
  %s8 = scalar_select 0, %s7, %s5
  $region1: #{tpu_custom_call.1} parent=0
    #allocation2 [shape = 'u8[131072]{0}', space=vmem, size = 0x20000, scoped, tag = 'input window, operand 0']
    #allocation3 [shape = 's32[2]{0}', space=sflag, size = 0x8, scoped, tag = 'scoped memory for tpu_custom_call.1']
    #allocation4 [shape = 's32[2]{0}', space=sflag, size = 0x8, scoped, tag = 'scoped memory for tpu_custom_call.1']
    #allocation5 [shape = 'u8[32768]{0}', space=vmem, size = 0x8000, scoped, tag = 'input window, operand 1, single buffered']
    #allocation6 [shape = 's32[1]{0}', space=sflag, size = 0x4, scoped, tag = 'scoped memory for tpu_custom_call.1']
    #allocation7 [shape = 'u8[262144]{0}', space=vmem, size = 0x40000, scoped, tag = 'output window, operand 0']
    %9 = vsyncpa [#allocation3], 0
    %s10 = scalar_lea.sflag [#allocation3], 1
    %11 = vsyncpa %s10, 0
    %12 = vsyncpa [#allocation6], 0
    %13 = vsyncpa [#allocation4], 0
    %s14 = scalar_lea.sflag [#allocation4], 1
    %15 = vsyncpa %s14, 0
    loop: start=0, step=1, limit=4
    $region2: #{tpu_custom_call.1} parent=1 // loop_pre_header
      _
    $region3: #{tpu_custom_call.1} parent=1 // loop_header
      %s17 = sphi 0, %s21
      %p18 = scmp.ge.s32.totalorder %s17, 4
      %s27 = sphi 0, %s29
      %s30 = sphi 0, %s27
      %s31 = sphi 0, %s30
      %s47 = sphi 0, %s31
      %s51 = sphi 0, %s51
      %s53 = sphi 0, %s51
      %s54 = sphi 0, %s53
      %s68 = sphi 0, %s54
      %s72 = sphi 0, %s72
      %s74 = sphi 0, %s72
      %s75 = sphi 0, %s74
      %s89 = sphi 0, %s75
      %s93 = sphi 0, %s93
      %s95 = sphi 0, %s93
      %s96 = sphi 0, %s95
      %s110 = sphi 0, %s96
      %s116 = sphi 0, %s118
      %s119 = sphi 0, %s116
      %s120 = sphi 0, %s119
      %s136 = sphi 0, %s120
    $region4: #{tpu_custom_call.1} parent=1 // loop_header_branch
      %20 = sbr.rel (%p18) target = $region8
    $region5: #{tpu_custom_call.1} parent=1 // loop_body
      %s22 = ssub.s32 %s17, 1
      %s23 = ssub.s32 %s17, 2
      %s24 = sadd.s32 %s17, 1
      %s25 = ssub.s32 %s17, %s24
      %p26 = scmp.eq.s32.totalorder %s25, 0
      %s28 = sadd.s32 %s27, 1
      %s29 = scalar_select %p26, %s27, %s28
      %p32 = pneg %p26
      %p33 = scmp.eq.s32.totalorder %s17, 1
      %p34 = por %p32, %p33
      %p35 = scmp.ne.s32.totalorder %s27, %s30
      %p36 = scmp.eq.s32.totalorder %s17, 0
      %p37 = por %p35, %p36
      %p38 = scmp.ne.s32.totalorder %s27, %s30
      %p39 = scmp.eq.s32.totalorder %s22, 1
      %p40 = por %p38, %p39
      %p41 = scmp.ne.s32.totalorder %s30, %s31
      %p42 = scmp.eq.s32.totalorder %s22, 0
      %p43 = por %p41, %p42
      %p44 = scmp.ne.s32.totalorder %s30, %s31
      %p45 = scmp.eq.s32.totalorder %s23, 1
      %p46 = por %p44, %p45
      %p48 = scmp.ne.s32.totalorder %s31, %s47
      %p49 = scmp.eq.s32.totalorder %s23, 0
      %p50 = por %p48, %p49
      %s52 = sadd.s32 %s51, 1
      %p55 = scmp.eq.s32.totalorder %s17, 1
      %p56 = scmp.ne.s32.totalorder %s51, %s53
      %p57 = scmp.eq.s32.totalorder %s17, 0
      %p58 = por %p56, %p57
      %p59 = scmp.ne.s32.totalorder %s51, %s53
      %p60 = scmp.eq.s32.totalorder %s22, 1
      %p61 = por %p59, %p60
      %p62 = scmp.ne.s32.totalorder %s53, %s54
      %p63 = scmp.eq.s32.totalorder %s22, 0
      %p64 = por %p62, %p63
      %p65 = scmp.ne.s32.totalorder %s53, %s54
      %p66 = scmp.eq.s32.totalorder %s23, 1
      %p67 = por %p65, %p66
      %p69 = scmp.ne.s32.totalorder %s54, %s68
      %p70 = scmp.eq.s32.totalorder %s23, 0
      %p71 = por %p69, %p70
      %s73 = sadd.s32 %s72, 1
      %p76 = scmp.eq.s32.totalorder %s17, 1
      %p77 = scmp.ne.s32.totalorder %s72, %s74
      %p78 = scmp.eq.s32.totalorder %s17, 0
      %p79 = por %p77, %p78
      %p80 = scmp.ne.s32.totalorder %s72, %s74
      %p81 = scmp.eq.s32.totalorder %s22, 1
      %p82 = por %p80, %p81
      %p83 = scmp.ne.s32.totalorder %s74, %s75
      %p84 = scmp.eq.s32.totalorder %s22, 0
      %p85 = por %p83, %p84
      %p86 = scmp.ne.s32.totalorder %s74, %s75
      %p87 = scmp.eq.s32.totalorder %s23, 1
      %p88 = por %p86, %p87
      %p90 = scmp.ne.s32.totalorder %s75, %s89
      %p91 = scmp.eq.s32.totalorder %s23, 0
      %p92 = por %p90, %p91
      %s94 = sadd.s32 %s93, 1
      %p97 = scmp.eq.s32.totalorder %s17, 1
      %p98 = scmp.ne.s32.totalorder %s93, %s95
      %p99 = scmp.eq.s32.totalorder %s17, 0
      %p100 = por %p98, %p99
      %p101 = scmp.ne.s32.totalorder %s93, %s95
      %p102 = scmp.eq.s32.totalorder %s22, 1
      %p103 = por %p101, %p102
      %p104 = scmp.ne.s32.totalorder %s95, %s96
      %p105 = scmp.eq.s32.totalorder %s22, 0
      %p106 = por %p104, %p105
      %p107 = scmp.ne.s32.totalorder %s95, %s96
      %p108 = scmp.eq.s32.totalorder %s23, 1
      %p109 = por %p107, %p108
      %p111 = scmp.ne.s32.totalorder %s96, %s110
      %p112 = scmp.eq.s32.totalorder %s23, 0
      %p113 = por %p111, %p112
      %s114 = ssub.s32 %s17, %s24
      %p115 = scmp.eq.s32.totalorder %s114, 0
      %s117 = sadd.s32 %s116, 1
      %s118 = scalar_select %p115, %s116, %s117
      %p121 = pneg %p115
      %p122 = scmp.eq.s32.totalorder %s17, 1
      %p123 = por %p121, %p122
      %p124 = scmp.ne.s32.totalorder %s116, %s119
      %p125 = scmp.eq.s32.totalorder %s17, 0
      %p126 = por %p124, %p125
      %p127 = scmp.ne.s32.totalorder %s116, %s119
      %p128 = scmp.eq.s32.totalorder %s22, 1
      %p129 = por %p127, %p128
      %p130 = scmp.ne.s32.totalorder %s119, %s120
      %p131 = scmp.eq.s32.totalorder %s22, 0
      %p132 = por %p130, %p131
      %p133 = scmp.ne.s32.totalorder %s119, %s120
      %p134 = scmp.eq.s32.totalorder %s23, 1
      %p135 = por %p133, %p134
      %p137 = scmp.ne.s32.totalorder %s120, %s136
      %p138 = scmp.eq.s32.totalorder %s23, 0
      %p139 = por %p137, %p138
      %p140 = scmp.le.s32.totalorder 1, %s17
      %p141 = scmp.lt.s32.totalorder %s17, 3
      %p142 = pnand %p140, %p141
      %p143 = pneg %p142
      // Predicated region
      $region9: #{tpu_custom_call.1} parent=5 // pred_check
        _
      $region10: #{tpu_custom_call.1} parent=5 // pred_check_branch
        %145 = sbr.rel (%p142) target = $region12
      $region11: #{tpu_custom_call.1} parent=5 // pred_region
        %s146 = ssub.s32 %s17, 1
        // Predicated region
        $region13: #{tpu_custom_call.1} parent=11 // pred_check
          %p147 = pneg %p64
        $region14: #{tpu_custom_call.1} parent=11 // pred_check_branch
          %149 = sbr.rel (%p147) target = $region16
        $region15: #{tpu_custom_call.1} parent=11 // pred_region
          %s151 = ssub.s32 1024, 1024
          %152 = vsyncadd [#allocation6], %s151
          %s153 = sshll.u32 [#allocation5], 4
          %s154 = int_to_ptr.vmem [resolvable:$true] %s153
          %159 = dma.hbm_to_vmem [thread:$0]  %s1, 1024, %s154, [#allocation6], 64, 64, 4
        $region16: #{tpu_custom_call.1} parent=11 // pred_fallthru
          _
        // Predicated region
        $region17: #{tpu_custom_call.1} parent=11 // pred_check
          %p160 = pneg %p85
        $region18: #{tpu_custom_call.1} parent=11 // pred_check_branch
          %162 = sbr.rel (%p160) target = $region20
        $region19: #{tpu_custom_call.1} parent=11 // pred_region
          _
        $region20: #{tpu_custom_call.1} parent=11 // pred_fallthru
          _
        // Predicated region
        $region21: #{tpu_custom_call.1} parent=11 // pred_check
          %p163 = pneg %p106
        $region22: #{tpu_custom_call.1} parent=11 // pred_check_branch
          %165 = sbr.rel (%p163) target = $region24
        $region23: #{tpu_custom_call.1} parent=11 // pred_region
          _
        $region24: #{tpu_custom_call.1} parent=11 // pred_fallthru
          _
      $region12: #{tpu_custom_call.1} parent=5 // pred_fallthru
        _
      %p166 = scmp.lt.s32.totalorder %s17, 2
      // Predicated region
      $region25: #{tpu_custom_call.1} parent=5 // pred_check
        %p167 = pneg %p166
      $region26: #{tpu_custom_call.1} parent=5 // pred_check_branch
        %169 = sbr.rel (%p167) target = $region28
      $region27: #{tpu_custom_call.1} parent=5 // pred_region
        // Predicated region
        $region29: #{tpu_custom_call.1} parent=27 // pred_check
          %p170 = pneg %p37
        $region30: #{tpu_custom_call.1} parent=27 // pred_check_branch
          %172 = sbr.rel (%p170) target = $region32
        $region31: #{tpu_custom_call.1} parent=27 // pred_region
          %s173 = sand.u32 %s27, 1
          %s174 = scalar_lea.sflag [#allocation3], %s173
          %s175 = sand.u32 %s27, 1
          %s176 = smul.addr %s175, 128
          %s177 = scalar_lea.vmem [#allocation2], %s176
          %s178 = smul.u32 32, %s17
          %s180 = ssub.s32 2048, 2048
          %181 = vsyncadd %s174, %s180
          %s182 = smul.addr %s178, 64
          %s183 = scalar_lea.hbm %s0, %s182
          %s184 = sshll.u32 %s177, 4
          %s185 = int_to_ptr.vmem [resolvable:$true] %s184
          %190 = dma.hbm_to_vmem [thread:$0]  %s183, 2048, %s185, %s174, 64, 64, 4
        $region32: #{tpu_custom_call.1} parent=27 // pred_fallthru
          _
      $region28: #{tpu_custom_call.1} parent=5 // pred_fallthru
        _
      %p191 = scmp.le.s32.totalorder 1, %s17
      %p192 = scmp.lt.s32.totalorder %s17, 3
      %p193 = pnand %p191, %p192
      %p194 = pneg %p193
      // Predicated region
      $region33: #{tpu_custom_call.1} parent=5 // pred_check
        _
      $region34: #{tpu_custom_call.1} parent=5 // pred_check_branch
        %196 = sbr.rel (%p193) target = $region36
      $region35: #{tpu_custom_call.1} parent=5 // pred_region
        %s197 = ssub.s32 %s17, 1
        %s198 = sand.u32 %s30, 1
        %s199 = scalar_lea.sflag [#allocation3], %s198
        %s200 = sand.u32 %s30, 1
        %s201 = smul.addr %s200, 128
        %s202 = scalar_lea.vmem [#allocation2], %s201
        // Predicated region
        $region37: #{tpu_custom_call.1} parent=35 // pred_check
          %p203 = pneg %p43
        $region38: #{tpu_custom_call.1} parent=35 // pred_check_branch
          %205 = sbr.rel (%p203) target = $region40
        $region39: #{tpu_custom_call.1} parent=35 // pred_region
          %206 = dma.done %s199, 2048
        $region40: #{tpu_custom_call.1} parent=35 // pred_fallthru
          _
        // Predicated region
        $region41: #{tpu_custom_call.1} parent=35 // pred_check
          %p207 = pneg %p64
        $region42: #{tpu_custom_call.1} parent=35 // pred_check_branch
          %209 = sbr.rel (%p207) target = $region44
        $region43: #{tpu_custom_call.1} parent=35 // pred_region
          %210 = dma.done [#allocation6], 1024
        $region44: #{tpu_custom_call.1} parent=35 // pred_fallthru
          _
        %s211 = sand.u32 %s30, 1
        %s212 = scalar_lea.sflag [#allocation3], %s211
        %s213 = sand.u32 %s30, 1
        %s214 = smul.addr %s213, 128
        %s215 = scalar_lea.vmem [#allocation2], %s214
        %p216 = pneg %p43
        %p217 = pneg %p40
        %p218 = pneg %p64
        %p219 = pneg %p61
        %p220 = pneg %p85
        %p221 = pneg %p82
        %p222 = pneg %p106
        %p223 = pneg %p103
        %p224 = pneg %p132
        %p225 = pneg %p129
        %s226 = sand.u32 %s119, 1
        %s227 = scalar_lea.sflag [#allocation4], %s226
        %s228 = sand.u32 %s119, 1
        %s229 = smul.addr %s228, 256
        %s230 = scalar_lea.vmem [#allocation7], %s229
        %s231 = smul.u32 32, %s22
        %s232 = smul.u32 32, %s22
        %v234 = vld [vmem:[%s202] sm:$0xf]
        %v235 = vld [vmem:[%s202 + $0x4] sm:$0xf]
        %v236 = vld [vmem:[%s202 + $0x8] sm:$0xf]
        %v237 = vld [vmem:[%s202 + $0xc] sm:$0xf]
        %v238 = vld [vmem:[%s202 + $0x10] sm:$0xf]
        %v239 = vld [vmem:[%s202 + $0x14] sm:$0xf]
        %v240 = vld [vmem:[%s202 + $0x18] sm:$0xf]
        %v241 = vld [vmem:[%s202 + $0x1c] sm:$0xf]
        %v242 = vld [vmem:[%s202 + $0x20] sm:$0xf]
        %v243 = vld [vmem:[%s202 + $0x24] sm:$0xf]
        %v244 = vld [vmem:[%s202 + $0x28] sm:$0xf]
        %v245 = vld [vmem:[%s202 + $0x2c] sm:$0xf]
        %v246 = vld [vmem:[%s202 + $0x30] sm:$0xf]
        %v247 = vld [vmem:[%s202 + $0x34] sm:$0xf]
        %v248 = vld [vmem:[%s202 + $0x38] sm:$0xf]
        %v249 = vld [vmem:[%s202 + $0x3c] sm:$0xf]
        %v250 = vld [vmem:[%s202 + $0x40] sm:$0xf]
        %v251 = vld [vmem:[%s202 + $0x44] sm:$0xf]
        %v252 = vld [vmem:[%s202 + $0x48] sm:$0xf]
        %v253 = vld [vmem:[%s202 + $0x4c] sm:$0xf]
        %v254 = vld [vmem:[%s202 + $0x50] sm:$0xf]
        %v255 = vld [vmem:[%s202 + $0x54] sm:$0xf]
        %v256 = vld [vmem:[%s202 + $0x58] sm:$0xf]
        %v257 = vld [vmem:[%s202 + $0x5c] sm:$0xf]
        %v258 = vld [vmem:[%s202 + $0x60] sm:$0xf]
        %v259 = vld [vmem:[%s202 + $0x64] sm:$0xf]
        %v260 = vld [vmem:[%s202 + $0x68] sm:$0xf]
        %v261 = vld [vmem:[%s202 + $0x6c] sm:$0xf]
        %v262 = vld [vmem:[%s202 + $0x70] sm:$0xf]
        %v263 = vld [vmem:[%s202 + $0x74] sm:$0xf]
        %v264 = vld [vmem:[%s202 + $0x78] sm:$0xf]
        %v265 = vld [vmem:[%s202 + $0x7c] sm:$0xf]
        %v266 = vld [vmem:[#allocation5] sm:$0xf]
        %v267 = vld [vmem:[#allocation5 + $0x4] sm:$0xf]
        %v268 = vld [vmem:[#allocation5 + $0x8] sm:$0xf]
        %v269 = vld [vmem:[#allocation5 + $0xc] sm:$0xf]
        %v270 = vld [vmem:[#allocation5 + $0x10] sm:$0xf]
        %v271 = vld [vmem:[#allocation5 + $0x14] sm:$0xf]
        %v272 = vld [vmem:[#allocation5 + $0x18] sm:$0xf]
        %v273 = vld [vmem:[#allocation5 + $0x1c] sm:$0xf]
        %v274 = vld [vmem:[#allocation5 + $0x20] sm:$0xf]
        %v275 = vld [vmem:[#allocation5 + $0x24] sm:$0xf]
        %v276 = vld [vmem:[#allocation5 + $0x28] sm:$0xf]
        %v277 = vld [vmem:[#allocation5 + $0x2c] sm:$0xf]
        %v278 = vld [vmem:[#allocation5 + $0x30] sm:$0xf]
        %v279 = vld [vmem:[#allocation5 + $0x34] sm:$0xf]
        %v280 = vld [vmem:[#allocation5 + $0x38] sm:$0xf]
        %v281 = vld [vmem:[#allocation5 + $0x3c] sm:$0xf]
        %v314 = vunpack.c.l.b16 %v234
        %v315 = vunpack.c.l.b16 %v235
        %v316 = vunpack.c.l.b16 %v236
        %v317 = vunpack.c.l.b16 %v237
        %v318 = vunpack.c.l.b16 %v238
        %v319 = vunpack.c.l.b16 %v239
        %v320 = vunpack.c.l.b16 %v240
        %v321 = vunpack.c.l.b16 %v241
        %v322 = vunpack.c.l.b16 %v242
        %v323 = vunpack.c.l.b16 %v243
        %v324 = vunpack.c.l.b16 %v244
        %v325 = vunpack.c.l.b16 %v245
        %v326 = vunpack.c.l.b16 %v246
        %v327 = vunpack.c.l.b16 %v247
        %v328 = vunpack.c.l.b16 %v248
        %v329 = vunpack.c.l.b16 %v249
        %v330 = vunpack.c.l.b16 %v250
        %v331 = vunpack.c.l.b16 %v251
        %v332 = vunpack.c.l.b16 %v252
        %v333 = vunpack.c.l.b16 %v253
        %v334 = vunpack.c.l.b16 %v254
        %v335 = vunpack.c.l.b16 %v255
        %v336 = vunpack.c.l.b16 %v256
        %v337 = vunpack.c.l.b16 %v257
        %v338 = vunpack.c.l.b16 %v258
        %v339 = vunpack.c.l.b16 %v259
        %v340 = vunpack.c.l.b16 %v260
        %v341 = vunpack.c.l.b16 %v261
        %v342 = vunpack.c.l.b16 %v262
        %v343 = vunpack.c.l.b16 %v263
        %v344 = vunpack.c.l.b16 %v264
        %v345 = vunpack.c.l.b16 %v265
        %v346 = vpack.c.b16 %v315, %v314
        %v347 = vpack.c.b16 %v317, %v316
        %v348 = vpack.c.b16 %v319, %v318
        %v349 = vpack.c.b16 %v321, %v320
        %v350 = vpack.c.b16 %v323, %v322
        %v351 = vpack.c.b16 %v325, %v324
        %v352 = vpack.c.b16 %v327, %v326
        %v353 = vpack.c.b16 %v329, %v328
        %v354 = vpack.c.b16 %v331, %v330
        %v355 = vpack.c.b16 %v333, %v332
        %v356 = vpack.c.b16 %v335, %v334
        %v357 = vpack.c.b16 %v337, %v336
        %v358 = vpack.c.b16 %v339, %v338
        %v359 = vpack.c.b16 %v341, %v340
        %v360 = vpack.c.b16 %v343, %v342
        %v361 = vpack.c.b16 %v345, %v344
        %v394 = vunpack.c.l.b16 %v266
        %v395 = vunpack.c.l.b16 %v267
        %v396 = vunpack.c.l.b16 %v268
        %v397 = vunpack.c.l.b16 %v269
        %v398 = vunpack.c.l.b16 %v270
        %v399 = vunpack.c.l.b16 %v271
        %v400 = vunpack.c.l.b16 %v272
        %v401 = vunpack.c.l.b16 %v273
        %v402 = vunpack.c.l.b16 %v274
        %v403 = vunpack.c.l.b16 %v275
        %v404 = vunpack.c.l.b16 %v276
        %v405 = vunpack.c.l.b16 %v277
        %v406 = vunpack.c.l.b16 %v278
        %v407 = vunpack.c.l.b16 %v279
        %v408 = vunpack.c.l.b16 %v280
        %v409 = vunpack.c.l.b16 %v281
        %v410 = vpack.c.b16 %v395, %v394
        %v411 = vpack.c.b16 %v397, %v396
        %v412 = vpack.c.b16 %v399, %v398
        %v413 = vpack.c.b16 %v401, %v400
        %v414 = vpack.c.b16 %v403, %v402
        %v415 = vpack.c.b16 %v405, %v404
        %v416 = vpack.c.b16 %v407, %v406
        %v417 = vpack.c.b16 %v409, %v408
        %426 = vmatprep.subr.bf16.mxu0 0
        %427 = vmatpush1.bf16.msra.mxu0 %v417
        %428 = vmatprep.subr.bf16.mxu0 0
        %429 = vmatpush1.bf16.msra.mxu0 %v416
        %430 = vmatprep.subr.bf16.mxu0 0
        %431 = vmatpush1.bf16.msra.mxu0 %v415
        %432 = vmatprep.subr.bf16.mxu0 0
        %433 = vmatpush1.bf16.msra.mxu0 %v414
        %434 = vmatprep.subr.bf16.mxu0 0
        %435 = vmatpush1.bf16.msra.mxu0 %v413
        %436 = vmatprep.subr.bf16.mxu0 0
        %437 = vmatpush1.bf16.msra.mxu0 %v412
        %438 = vmatprep.subr.bf16.mxu0 0
        %439 = vmatpush1.bf16.msra.mxu0 %v411
        %440 = vmatprep.subr.bf16.mxu0 0
        %441 = vmatpush1.bf16.msra.mxu0 %v410
        %442 = vmatprep.subr.bf16.mxu0 0
        %443 = vmatpush2.bf16.msra.mxu0 0
        %444 = vmatprep.subr.bf16.mxu0 0
        %445 = vmatpush2.bf16.msra.mxu0 0
        %446 = vmatprep.subr.bf16.mxu0 0
        %447 = vmatpush2.bf16.msra.mxu0 0
        %448 = vmatprep.subr.bf16.mxu0 0
        %449 = vmatpush2.bf16.msra.mxu0 0
        %450 = vmatprep.subr.bf16.mxu0 0
        %451 = vmatpush2.bf16.msra.mxu0 0
        %452 = vmatprep.subr.bf16.mxu0 0
        %453 = vmatpush2.bf16.msra.mxu0 0
        %454 = vmatprep.subr.bf16.mxu0 0
        %455 = vmatpush2.bf16.msra.mxu0 0
        %456 = vmatprep.subr.bf16.mxu0 0
        %457 = vmatpush2.bf16.msra.mxu0 0
        %458 = vmatprep.mubr.bf16.mxu0 0
        %459 = vmatmul.mubr.bf16.gmra.mxu0 %v346
        %v460 = vpop.f32.mrf.mxu0
        %v461 = vadd.f32 0.0, %v460
        %v462 = vpop.f32.mrf.mxu0
        %v463 = vpop.f32.mrf.mxu0
        %v464 = vadd.f32 0.0, %v463
        %v465 = vpop.f32.mrf.mxu0
        %466 = vmatprep.mubr.bf16.mxu0 0
        %467 = vmatmul.mubr.bf16.gmra.mxu0 %v347
        %v468 = vpop.f32.mrf.mxu0
        %v469 = vadd.f32 0.0, %v468
        %v470 = vpop.f32.mrf.mxu0
        %v471 = vpop.f32.mrf.mxu0
        %v472 = vadd.f32 0.0, %v471
        %v473 = vpop.f32.mrf.mxu0
        %474 = vmatprep.mubr.bf16.mxu0 0
        %475 = vmatmul.mubr.bf16.gmra.mxu0 %v348
        %v476 = vpop.f32.mrf.mxu0
        %v477 = vadd.f32 0.0, %v476
        %v478 = vpop.f32.mrf.mxu0
        %v479 = vpop.f32.mrf.mxu0
        %v480 = vadd.f32 0.0, %v479
        %v481 = vpop.f32.mrf.mxu0
        %482 = vmatprep.mubr.bf16.mxu0 0
        %483 = vmatmul.mubr.bf16.gmra.mxu0 %v349
        %v484 = vpop.f32.mrf.mxu0
        %v485 = vadd.f32 0.0, %v484
        %v486 = vpop.f32.mrf.mxu0
        %v487 = vpop.f32.mrf.mxu0
        %v488 = vadd.f32 0.0, %v487
        %v489 = vpop.f32.mrf.mxu0
        %490 = vmatprep.mubr.bf16.mxu0 0
        %491 = vmatmul.mubr.bf16.gmra.mxu0 %v350
        %v492 = vpop.f32.mrf.mxu0
        %v493 = vadd.f32 0.0, %v492
        %v494 = vpop.f32.mrf.mxu0
        %v495 = vpop.f32.mrf.mxu0
        %v496 = vadd.f32 0.0, %v495
        %v497 = vpop.f32.mrf.mxu0
        %498 = vmatprep.mubr.bf16.mxu0 0
        %499 = vmatmul.mubr.bf16.gmra.mxu0 %v351
        %v500 = vpop.f32.mrf.mxu0
        %v501 = vadd.f32 0.0, %v500
        %v502 = vpop.f32.mrf.mxu0
        %v503 = vpop.f32.mrf.mxu0
        %v504 = vadd.f32 0.0, %v503
        %v505 = vpop.f32.mrf.mxu0
        %506 = vmatprep.mubr.bf16.mxu0 0
        %507 = vmatmul.mubr.bf16.gmra.mxu0 %v352
        %v508 = vpop.f32.mrf.mxu0
        %v509 = vadd.f32 0.0, %v508
        %v510 = vpop.f32.mrf.mxu0
        %v511 = vpop.f32.mrf.mxu0
        %v512 = vadd.f32 0.0, %v511
        %v513 = vpop.f32.mrf.mxu0
        %514 = vmatprep.mubr.bf16.mxu0 0
        %515 = vmatmul.mubr.bf16.gmra.mxu0 %v353
        %v516 = vpop.f32.mrf.mxu0
        %v517 = vadd.f32 0.0, %v516
        %v518 = vpop.f32.mrf.mxu0
        %v519 = vpop.f32.mrf.mxu0
        %v520 = vadd.f32 0.0, %v519
        %v521 = vpop.f32.mrf.mxu0
        %522 = vmatprep.mubr.bf16.mxu0 0
        %523 = vmatmul.mubr.bf16.gmra.mxu0 %v354
        %v524 = vpop.f32.mrf.mxu0
        %v525 = vadd.f32 0.0, %v524
        %v526 = vpop.f32.mrf.mxu0
        %v527 = vpop.f32.mrf.mxu0
        %v528 = vadd.f32 0.0, %v527
        %v529 = vpop.f32.mrf.mxu0
        %530 = vmatprep.mubr.bf16.mxu0 0
        %531 = vmatmul.mubr.bf16.gmra.mxu0 %v355
        %v532 = vpop.f32.mrf.mxu0
        %v533 = vadd.f32 0.0, %v532
        %v534 = vpop.f32.mrf.mxu0
        %v535 = vpop.f32.mrf.mxu0
        %v536 = vadd.f32 0.0, %v535
        %v537 = vpop.f32.mrf.mxu0
        %538 = vmatprep.mubr.bf16.mxu0 0
        %539 = vmatmul.mubr.bf16.gmra.mxu0 %v356
        %v540 = vpop.f32.mrf.mxu0
        %v541 = vadd.f32 0.0, %v540
        %v542 = vpop.f32.mrf.mxu0
        %v543 = vpop.f32.mrf.mxu0
        %v544 = vadd.f32 0.0, %v543
        %v545 = vpop.f32.mrf.mxu0
        %546 = vmatprep.mubr.bf16.mxu0 0
        %547 = vmatmul.mubr.bf16.gmra.mxu0 %v357
        %v548 = vpop.f32.mrf.mxu0
        %v549 = vadd.f32 0.0, %v548
        %v550 = vpop.f32.mrf.mxu0
        %v551 = vpop.f32.mrf.mxu0
        %v552 = vadd.f32 0.0, %v551
        %v553 = vpop.f32.mrf.mxu0
        %554 = vmatprep.mubr.bf16.mxu0 0
        %555 = vmatmul.mubr.bf16.gmra.mxu0 %v358
        %v556 = vpop.f32.mrf.mxu0
        %v557 = vadd.f32 0.0, %v556
        %v558 = vpop.f32.mrf.mxu0
        %v559 = vpop.f32.mrf.mxu0
        %v560 = vadd.f32 0.0, %v559
        %v561 = vpop.f32.mrf.mxu0
        %562 = vmatprep.mubr.bf16.mxu0 0
        %563 = vmatmul.mubr.bf16.gmra.mxu0 %v359
        %v564 = vpop.f32.mrf.mxu0
        %v565 = vadd.f32 0.0, %v564
        %v566 = vpop.f32.mrf.mxu0
        %v567 = vpop.f32.mrf.mxu0
        %v568 = vadd.f32 0.0, %v567
        %v569 = vpop.f32.mrf.mxu0
        %570 = vmatprep.mubr.bf16.mxu0 0
        %571 = vmatmul.mubr.bf16.gmra.mxu0 %v360
        %v572 = vpop.f32.mrf.mxu0
        %v573 = vadd.f32 0.0, %v572
        %v574 = vpop.f32.mrf.mxu0
        %v575 = vpop.f32.mrf.mxu0
        %v576 = vadd.f32 0.0, %v575
        %v577 = vpop.f32.mrf.mxu0
        %578 = vmatprep.mubr.bf16.mxu0 0
        %579 = vmatmul.mubr.bf16.gmra.mxu0 %v361
        %v580 = vpop.f32.mrf.mxu0
        %v581 = vadd.f32 0.0, %v580
        %v582 = vpop.f32.mrf.mxu0
        %v583 = vpop.f32.mrf.mxu0
        %v584 = vadd.f32 0.0, %v583
        %v585 = vpop.f32.mrf.mxu0
        %586 = vdwg.mxu0
        %v587 = vld [vmem:[%s2] sm:$0x1]
        %v589 = vlaneseq
        %v590 = vshrl.u32 %v589, 7
        %v591 = vsub.s32 0, %v590
        %v592 = vrot.slane %v587, %v591
        %v594 = vmul.f32 %v461, %v592
        %v595 = vmul.f32 %v464, %v592
        %v596 = vmul.f32 %v469, %v592
        %v597 = vmul.f32 %v472, %v592
        %v598 = vmul.f32 %v477, %v592
        %v599 = vmul.f32 %v480, %v592
        %v600 = vmul.f32 %v485, %v592
        %v601 = vmul.f32 %v488, %v592
        %v602 = vmul.f32 %v493, %v592
        %v603 = vmul.f32 %v496, %v592
        %v604 = vmul.f32 %v501, %v592
        %v605 = vmul.f32 %v504, %v592
        %v606 = vmul.f32 %v509, %v592
        %v607 = vmul.f32 %v512, %v592
        %v608 = vmul.f32 %v517, %v592
        %v609 = vmul.f32 %v520, %v592
        %v610 = vmul.f32 %v525, %v592
        %v611 = vmul.f32 %v528, %v592
        %v612 = vmul.f32 %v533, %v592
        %v613 = vmul.f32 %v536, %v592
        %v614 = vmul.f32 %v541, %v592
        %v615 = vmul.f32 %v544, %v592
        %v616 = vmul.f32 %v549, %v592
        %v617 = vmul.f32 %v552, %v592
        %v618 = vmul.f32 %v557, %v592
        %v619 = vmul.f32 %v560, %v592
        %v620 = vmul.f32 %v565, %v592
        %v621 = vmul.f32 %v568, %v592
        %v622 = vmul.f32 %v573, %v592
        %v623 = vmul.f32 %v576, %v592
        %v624 = vmul.f32 %v581, %v592
        %v625 = vmul.f32 %v584, %v592
        %v626 = vld [vmem:[%s3] sm:$0x1]
        %v628 = vlaneseq
        %v629 = vshrl.u32 %v628, 7
        %v630 = vsub.s32 0, %v629
        %v631 = vrot.slane %v626, %v630
        %v633 = vadd.f32 %v594, %v631
        %v634 = vadd.f32 %v595, %v631
        %v635 = vadd.f32 %v596, %v631
        %v636 = vadd.f32 %v597, %v631
        %v637 = vadd.f32 %v598, %v631
        %v638 = vadd.f32 %v599, %v631
        %v639 = vadd.f32 %v600, %v631
        %v640 = vadd.f32 %v601, %v631
        %v641 = vadd.f32 %v602, %v631
        %v642 = vadd.f32 %v603, %v631
        %v643 = vadd.f32 %v604, %v631
        %v644 = vadd.f32 %v605, %v631
        %v645 = vadd.f32 %v606, %v631
        %v646 = vadd.f32 %v607, %v631
        %v647 = vadd.f32 %v608, %v631
        %v648 = vadd.f32 %v609, %v631
        %v649 = vadd.f32 %v610, %v631
        %v650 = vadd.f32 %v611, %v631
        %v651 = vadd.f32 %v612, %v631
        %v652 = vadd.f32 %v613, %v631
        %v653 = vadd.f32 %v614, %v631
        %v654 = vadd.f32 %v615, %v631
        %v655 = vadd.f32 %v616, %v631
        %v656 = vadd.f32 %v617, %v631
        %v657 = vadd.f32 %v618, %v631
        %v658 = vadd.f32 %v619, %v631
        %v659 = vadd.f32 %v620, %v631
        %v660 = vadd.f32 %v621, %v631
        %v661 = vadd.f32 %v622, %v631
        %v662 = vadd.f32 %v623, %v631
        %v663 = vadd.f32 %v624, %v631
        %v664 = vadd.f32 %v625, %v631
        %v665 = vxor.u32 %v633, 2147483648
        %v666 = vxor.u32 %v634, 2147483648
        %v667 = vxor.u32 %v635, 2147483648
        %v668 = vxor.u32 %v636, 2147483648
        %v669 = vxor.u32 %v637, 2147483648
        %v670 = vxor.u32 %v638, 2147483648
        %v671 = vxor.u32 %v639, 2147483648
        %v672 = vxor.u32 %v640, 2147483648
        %v673 = vxor.u32 %v641, 2147483648
        %v674 = vxor.u32 %v642, 2147483648
        %v675 = vxor.u32 %v643, 2147483648
        %v676 = vxor.u32 %v644, 2147483648
        %v677 = vxor.u32 %v645, 2147483648
        %v678 = vxor.u32 %v646, 2147483648
        %v679 = vxor.u32 %v647, 2147483648
        %v680 = vxor.u32 %v648, 2147483648
        %v681 = vxor.u32 %v649, 2147483648
        %v682 = vxor.u32 %v650, 2147483648
        %v683 = vxor.u32 %v651, 2147483648
        %v684 = vxor.u32 %v652, 2147483648
        %v685 = vxor.u32 %v653, 2147483648
        %v686 = vxor.u32 %v654, 2147483648
        %v687 = vxor.u32 %v655, 2147483648
        %v688 = vxor.u32 %v656, 2147483648
        %v689 = vxor.u32 %v657, 2147483648
        %v690 = vxor.u32 %v658, 2147483648
        %v691 = vxor.u32 %v659, 2147483648
        %v692 = vxor.u32 %v660, 2147483648
        %v693 = vxor.u32 %v661, 2147483648
        %v694 = vxor.u32 %v662, 2147483648
        %v695 = vxor.u32 %v663, 2147483648
        %v696 = vxor.u32 %v664, 2147483648
        %v697 = vmul.f32 %v665, 1.442695
        %v698 = vpow.pop %v697
        %v699 = vmul.f32 %v666, 1.442695
        %v700 = vpow.pop %v699
        %v701 = vmul.f32 %v667, 1.442695
        %v702 = vpow.pop %v701
        %v703 = vmul.f32 %v668, 1.442695
        %v704 = vpow.pop %v703
        %v705 = vmul.f32 %v669, 1.442695
        %v706 = vpow.pop %v705
        %v707 = vmul.f32 %v670, 1.442695
        %v708 = vpow.pop %v707
        %v709 = vmul.f32 %v671, 1.442695
        %v710 = vpow.pop %v709
        %v711 = vmul.f32 %v672, 1.442695
        %v712 = vpow.pop %v711
        %v713 = vmul.f32 %v673, 1.442695
        %v714 = vpow.pop %v713
        %v715 = vmul.f32 %v674, 1.442695
        %v716 = vpow.pop %v715
        %v717 = vmul.f32 %v675, 1.442695
        %v718 = vpow.pop %v717
        %v719 = vmul.f32 %v676, 1.442695
        %v720 = vpow.pop %v719
        %v721 = vmul.f32 %v677, 1.442695
        %v722 = vpow.pop %v721
        %v723 = vmul.f32 %v678, 1.442695
        %v724 = vpow.pop %v723
        %v725 = vmul.f32 %v679, 1.442695
        %v726 = vpow.pop %v725
        %v727 = vmul.f32 %v680, 1.442695
        %v728 = vpow.pop %v727
        %v729 = vmul.f32 %v681, 1.442695
        %v730 = vpow.pop %v729
        %v731 = vmul.f32 %v682, 1.442695
        %v732 = vpow.pop %v731
        %v733 = vmul.f32 %v683, 1.442695
        %v734 = vpow.pop %v733
        %v735 = vmul.f32 %v684, 1.442695
        %v736 = vpow.pop %v735
        %v737 = vmul.f32 %v685, 1.442695
        %v738 = vpow.pop %v737
        %v739 = vmul.f32 %v686, 1.442695
        %v740 = vpow.pop %v739
        %v741 = vmul.f32 %v687, 1.442695
        %v742 = vpow.pop %v741
        %v743 = vmul.f32 %v688, 1.442695
        %v744 = vpow.pop %v743
        %v745 = vmul.f32 %v689, 1.442695
        %v746 = vpow.pop %v745
        %v747 = vmul.f32 %v690, 1.442695
        %v748 = vpow.pop %v747
        %v749 = vmul.f32 %v691, 1.442695
        %v750 = vpow.pop %v749
        %v751 = vmul.f32 %v692, 1.442695
        %v752 = vpow.pop %v751
        %v753 = vmul.f32 %v693, 1.442695
        %v754 = vpow.pop %v753
        %v755 = vmul.f32 %v694, 1.442695
        %v756 = vpow.pop %v755
        %v757 = vmul.f32 %v695, 1.442695
        %v758 = vpow.pop %v757
        %v759 = vmul.f32 %v696, 1.442695
        %v760 = vpow.pop %v759
        %v761 = vadd.f32 %v698, 1.0
        %v762 = vadd.f32 %v700, 1.0
        %v763 = vadd.f32 %v702, 1.0
        %v764 = vadd.f32 %v704, 1.0
        %v765 = vadd.f32 %v706, 1.0
        %v766 = vadd.f32 %v708, 1.0
        %v767 = vadd.f32 %v710, 1.0
        %v768 = vadd.f32 %v712, 1.0
        %v769 = vadd.f32 %v714, 1.0
        %v770 = vadd.f32 %v716, 1.0
        %v771 = vadd.f32 %v718, 1.0
        %v772 = vadd.f32 %v720, 1.0
        %v773 = vadd.f32 %v722, 1.0
        %v774 = vadd.f32 %v724, 1.0
        %v775 = vadd.f32 %v726, 1.0
        %v776 = vadd.f32 %v728, 1.0
        %v777 = vadd.f32 %v730, 1.0
        %v778 = vadd.f32 %v732, 1.0
        %v779 = vadd.f32 %v734, 1.0
        %v780 = vadd.f32 %v736, 1.0
        %v781 = vadd.f32 %v738, 1.0
        %v782 = vadd.f32 %v740, 1.0
        %v783 = vadd.f32 %v742, 1.0
        %v784 = vadd.f32 %v744, 1.0
        %v785 = vadd.f32 %v746, 1.0
        %v786 = vadd.f32 %v748, 1.0
        %v787 = vadd.f32 %v750, 1.0
        %v788 = vadd.f32 %v752, 1.0
        %v789 = vadd.f32 %v754, 1.0
        %v790 = vadd.f32 %v756, 1.0
        %v791 = vadd.f32 %v758, 1.0
        %v792 = vadd.f32 %v760, 1.0
        %v793 = vrcp.pop %v761
        %v794 = vmul.f32 1.0, %v793
        %v795 = vrcp.pop %v762
        %v796 = vmul.f32 1.0, %v795
        %v797 = vrcp.pop %v763
        %v798 = vmul.f32 1.0, %v797
        %v799 = vrcp.pop %v764
        %v800 = vmul.f32 1.0, %v799
        %v801 = vrcp.pop %v765
        %v802 = vmul.f32 1.0, %v801
        %v803 = vrcp.pop %v766
        %v804 = vmul.f32 1.0, %v803
        %v805 = vrcp.pop %v767
        %v806 = vmul.f32 1.0, %v805
        %v807 = vrcp.pop %v768
        %v808 = vmul.f32 1.0, %v807
        %v809 = vrcp.pop %v769
        %v810 = vmul.f32 1.0, %v809
        %v811 = vrcp.pop %v770
        %v812 = vmul.f32 1.0, %v811
        %v813 = vrcp.pop %v771
        %v814 = vmul.f32 1.0, %v813
        %v815 = vrcp.pop %v772
        %v816 = vmul.f32 1.0, %v815
        %v817 = vrcp.pop %v773
        %v818 = vmul.f32 1.0, %v817
        %v819 = vrcp.pop %v774
        %v820 = vmul.f32 1.0, %v819
        %v821 = vrcp.pop %v775
        %v822 = vmul.f32 1.0, %v821
        %v823 = vrcp.pop %v776
        %v824 = vmul.f32 1.0, %v823
        %v825 = vrcp.pop %v777
        %v826 = vmul.f32 1.0, %v825
        %v827 = vrcp.pop %v778
        %v828 = vmul.f32 1.0, %v827
        %v829 = vrcp.pop %v779
        %v830 = vmul.f32 1.0, %v829
        %v831 = vrcp.pop %v780
        %v832 = vmul.f32 1.0, %v831
        %v833 = vrcp.pop %v781
        %v834 = vmul.f32 1.0, %v833
        %v835 = vrcp.pop %v782
        %v836 = vmul.f32 1.0, %v835
        %v837 = vrcp.pop %v783
        %v838 = vmul.f32 1.0, %v837
        %v839 = vrcp.pop %v784
        %v840 = vmul.f32 1.0, %v839
        %v841 = vrcp.pop %v785
        %v842 = vmul.f32 1.0, %v841
        %v843 = vrcp.pop %v786
        %v844 = vmul.f32 1.0, %v843
        %v845 = vrcp.pop %v787
        %v846 = vmul.f32 1.0, %v845
        %v847 = vrcp.pop %v788
        %v848 = vmul.f32 1.0, %v847
        %v849 = vrcp.pop %v789
        %v850 = vmul.f32 1.0, %v849
        %v851 = vrcp.pop %v790
        %v852 = vmul.f32 1.0, %v851
        %v853 = vrcp.pop %v791
        %v854 = vmul.f32 1.0, %v853
        %v855 = vrcp.pop %v792
        %v856 = vmul.f32 1.0, %v855
        %v857 = vmul.f32 %v633, %v794
        %v858 = vmul.f32 %v634, %v796
        %v859 = vmul.f32 %v635, %v798
        %v860 = vmul.f32 %v636, %v800
        %v861 = vmul.f32 %v637, %v802
        %v862 = vmul.f32 %v638, %v804
        %v863 = vmul.f32 %v639, %v806
        %v864 = vmul.f32 %v640, %v808
        %v865 = vmul.f32 %v641, %v810
        %v866 = vmul.f32 %v642, %v812
        %v867 = vmul.f32 %v643, %v814
        %v868 = vmul.f32 %v644, %v816
        %v869 = vmul.f32 %v645, %v818
        %v870 = vmul.f32 %v646, %v820
        %v871 = vmul.f32 %v647, %v822
        %v872 = vmul.f32 %v648, %v824
        %v873 = vmul.f32 %v649, %v826
        %v874 = vmul.f32 %v650, %v828
        %v875 = vmul.f32 %v651, %v830
        %v876 = vmul.f32 %v652, %v832
        %v877 = vmul.f32 %v653, %v834
        %v878 = vmul.f32 %v654, %v836
        %v879 = vmul.f32 %v655, %v838
        %v880 = vmul.f32 %v656, %v840
        %v881 = vmul.f32 %v657, %v842
        %v882 = vmul.f32 %v658, %v844
        %v883 = vmul.f32 %v659, %v846
        %v884 = vmul.f32 %v660, %v848
        %v885 = vmul.f32 %v661, %v850
        %v886 = vmul.f32 %v662, %v852
        %v887 = vmul.f32 %v663, %v854
        %v888 = vmul.f32 %v664, %v856
        %889 = vst [vmem:[%s230] sm:$0xff] %v857
        %890 = vst [vmem:[%s230 + $0x8] sm:$0xff] %v858
        %891 = vst [vmem:[%s230 + $0x10] sm:$0xff] %v859
        %892 = vst [vmem:[%s230 + $0x18] sm:$0xff] %v860
        %893 = vst [vmem:[%s230 + $0x20] sm:$0xff] %v861
        %894 = vst [vmem:[%s230 + $0x28] sm:$0xff] %v862
        %895 = vst [vmem:[%s230 + $0x30] sm:$0xff] %v863
        %896 = vst [vmem:[%s230 + $0x38] sm:$0xff] %v864
        %897 = vst [vmem:[%s230 + $0x40] sm:$0xff] %v865
        %898 = vst [vmem:[%s230 + $0x48] sm:$0xff] %v866
        %899 = vst [vmem:[%s230 + $0x50] sm:$0xff] %v867
        %900 = vst [vmem:[%s230 + $0x58] sm:$0xff] %v868
        %901 = vst [vmem:[%s230 + $0x60] sm:$0xff] %v869
        %902 = vst [vmem:[%s230 + $0x68] sm:$0xff] %v870
        %903 = vst [vmem:[%s230 + $0x70] sm:$0xff] %v871
        %904 = vst [vmem:[%s230 + $0x78] sm:$0xff] %v872
        %905 = vst [vmem:[%s230 + $0x80] sm:$0xff] %v873
        %906 = vst [vmem:[%s230 + $0x88] sm:$0xff] %v874
        %907 = vst [vmem:[%s230 + $0x90] sm:$0xff] %v875
        %908 = vst [vmem:[%s230 + $0x98] sm:$0xff] %v876
        %909 = vst [vmem:[%s230 + $0xa0] sm:$0xff] %v877
        %910 = vst [vmem:[%s230 + $0xa8] sm:$0xff] %v878
        %911 = vst [vmem:[%s230 + $0xb0] sm:$0xff] %v879
        %912 = vst [vmem:[%s230 + $0xb8] sm:$0xff] %v880
        %913 = vst [vmem:[%s230 + $0xc0] sm:$0xff] %v881
        %914 = vst [vmem:[%s230 + $0xc8] sm:$0xff] %v882
        %915 = vst [vmem:[%s230 + $0xd0] sm:$0xff] %v883
        %916 = vst [vmem:[%s230 + $0xd8] sm:$0xff] %v884
        %917 = vst [vmem:[%s230 + $0xe0] sm:$0xff] %v885
        %918 = vst [vmem:[%s230 + $0xe8] sm:$0xff] %v886
        %919 = vst [vmem:[%s230 + $0xf0] sm:$0xff] %v887
        %920 = vst [vmem:[%s230 + $0xf8] sm:$0xff] %v888
        %s921 = sand.u32 %s119, 1
        %s922 = scalar_lea.sflag [#allocation4], %s921
        %s923 = sand.u32 %s119, 1
        %s924 = smul.addr %s923, 256
        %s925 = scalar_lea.vmem [#allocation7], %s924
        // Predicated region
        $region45: #{tpu_custom_call.1} parent=35 // pred_check
          %p926 = pneg %p129
        $region46: #{tpu_custom_call.1} parent=35 // pred_check_branch
          %928 = sbr.rel (%p926) target = $region48
        $region47: #{tpu_custom_call.1} parent=35 // pred_region
          %s929 = smul.u32 32, %s22
          %s931 = ssub.s32 4096, 4096
          %932 = vsyncadd %s922, %s931
          %s933 = smul.addr %s929, 128
          %s934 = scalar_lea.hbm %s4, %s933
          %s935 = sshll.u32 %s925, 4
          %s936 = int_to_ptr.vmem [resolvable:$true] %s935
          %941 = dma.vmem_to_hbm [thread:$0]  %s936, 4096, %s934, %s922, 128, 128, 8
        $region48: #{tpu_custom_call.1} parent=35 // pred_fallthru
          _
      $region36: #{tpu_custom_call.1} parent=5 // pred_fallthru
        _
      %p942 = scmp.le.s32.totalorder 2, %s17
      // Predicated region
      $region49: #{tpu_custom_call.1} parent=5 // pred_check
        %p943 = pneg %p942
      $region50: #{tpu_custom_call.1} parent=5 // pred_check_branch
        %945 = sbr.rel (%p943) target = $region52
      $region51: #{tpu_custom_call.1} parent=5 // pred_region
        %s946 = ssub.s32 %s17, 2
        // Predicated region
        $region53: #{tpu_custom_call.1} parent=51 // pred_check
          %p947 = pneg %p135
        $region54: #{tpu_custom_call.1} parent=51 // pred_check_branch
          %949 = sbr.rel (%p947) target = $region56
        $region55: #{tpu_custom_call.1} parent=51 // pred_region
          %s950 = sand.u32 %s120, 1
          %s951 = scalar_lea.sflag [#allocation4], %s950
          %s952 = sand.u32 %s120, 1
          %s953 = smul.addr %s952, 256
          %s954 = scalar_lea.vmem [#allocation7], %s953
          %955 = dma.done %s951, 4096
        $region56: #{tpu_custom_call.1} parent=51 // pred_fallthru
          _
      $region52: #{tpu_custom_call.1} parent=5 // pred_fallthru
        _
    $region6: #{tpu_custom_call.1} parent=1 // loop_footer
      %s21 = sadd.s32 1, %s17
    $region7: #{tpu_custom_call.1} parent=1 // loop_footer_branch
      %16 = sbr.rel target = $region3
    $region8: #{tpu_custom_call.1} parent=1 // loop_exit
      _
    %956 = vsyncpa [#allocation3], 1
    %s957 = scalar_lea.sflag [#allocation3], 1
    %958 = vsyncpa %s957, 1
    %959 = vsyncpa [#allocation6], 1
    %960 = vsyncpa [#allocation4], 1
    %s961 = scalar_lea.sflag [#allocation4], 1
    %962 = vsyncpa %s961, 1

</llo_original>
